<compile_context>
chip_gen: v5e
topology: v5e:2x2
jax: 0.10.0
libtpu: 0.0.40
codegen_flags: <defaults>
</compile_context>

<pallas_src>
import functools

import jax
import jax.numpy as jnp
from jax.experimental import pallas as pl
from jax.experimental.pallas import tpu as pltpu


def _round_up(x, m):
    return ((x + m - 1) // m) * m


def _lddecoder_kernel(x_ref, w1_ref, b1_ref, w2_ref, b2_ref, o_ref):
    # Layer 1: single fused matmul (concat already folded into x / W1), f32 acc.
    h = jnp.dot(x_ref[...], w1_ref[...], preferred_element_type=jnp.float32)
    # Bias + ReLU in f32 (v5e-safe epilogue).
    h = jnp.maximum(h + b1_ref[...], 0.0)
    # Layer 2: cast activation to the weight dtype so the MXU path stays bf16
    # when bf16 operands are requested; accumulate in f32.
    out = jnp.dot(h.astype(w2_ref.dtype), w2_ref[...],
                  preferred_element_type=jnp.float32)
    o_ref[...] = (out + b2_ref[...]).astype(o_ref.dtype)


def ld_decoder_forward(states, actions, params, *, mxu_dtype=None, tb_max=256):
    """states: [B, state_dim], actions: [B, action_dim] -> [B, feature_dim].

    mxu_dtype: optional dtype (e.g. jnp.bfloat16) for the matmul operands on
    v6e/v7x; accumulation and the epilogue remain float32.
    """
    w1, b1, w2, b2 = params["w1"], params["b1"], params["w2"], params["b2"]

    B = states.shape[0]
    in_dim = states.shape[1] + actions.shape[1]
    hidden = w1.shape[1]
    feature_dim = w2.shape[1]
    out_dtype = states.dtype

    # Lane-dense padded dims (multiples of 128 on the last axis).
    IN_P = _round_up(in_dim, 128)
    H_P = _round_up(hidden, 128)
    F_P = _round_up(feature_dim, 128)

    # Batch tile: multiple of 8 sublanes, capped at tb_max rows.
    padded_B = _round_up(B, 8)
    TB = min(tb_max, padded_B)
    padded_B = _round_up(padded_B, TB)
    grid = (padded_B // TB,)

    # Fuse the concat in the wrapper (one matmul instead of two) and zero-pad
    # everything to the lane-dense layout. Zero padding is mathematically
    # inert: padded input cols hit zero W1 rows, padded hidden cols stay 0
    # through ReLU and hit zero W2 rows.
    x = jnp.concatenate([states, actions], axis=1)
    x = jnp.pad(x, ((0, padded_B - B), (0, IN_P - in_dim)))
    w1p = jnp.pad(w1, ((0, IN_P - in_dim), (0, H_P - hidden)))
    b1p = jnp.pad(b1, ((0, 0), (0, H_P - hidden))).astype(jnp.float32)
    w2p = jnp.pad(w2, ((0, H_P - hidden), (0, F_P - feature_dim)))
    b2p = jnp.pad(b2, ((0, 0), (0, F_P - feature_dim))).astype(jnp.float32)

    if mxu_dtype is not None:
        # Cast before the call so HBM->VMEM DMAs move the narrow dtype.
        x = x.astype(mxu_dtype)
        w1p = w1p.astype(mxu_dtype)
        w2p = w2p.astype(mxu_dtype)

    cost = pl.CostEstimate(
        flops=2 * padded_B * (IN_P * H_P + H_P * F_P),
        transcendentals=0,
        bytes_accessed=(x.size * x.dtype.itemsize
                        + w1p.size * w1p.dtype.itemsize
                        + w2p.size * w2p.dtype.itemsize
                        + b1p.size * 4 + b2p.size * 4
                        + padded_B * F_P * jnp.dtype(out_dtype).itemsize),
    )

    out_padded = pl.pallas_call(
        _lddecoder_kernel,
        out_shape=jax.ShapeDtypeStruct((padded_B, F_P), out_dtype),
        grid_spec=pltpu.PrefetchScalarGridSpec(
            num_scalar_prefetch=0,
            grid=grid,
            in_specs=[
                # Activations: tiled along the batch grid axis.
                pl.BlockSpec((TB, IN_P), lambda i: (i, 0)),
                # Weights / biases: constant index_map -> VMEM-resident.
                pl.BlockSpec((IN_P, H_P), lambda i: (0, 0)),
                pl.BlockSpec((1, H_P), lambda i: (0, 0)),
                pl.BlockSpec((H_P, F_P), lambda i: (0, 0)),
                pl.BlockSpec((1, F_P), lambda i: (0, 0)),
            ],
            out_specs=pl.BlockSpec((TB, F_P), lambda i: (i, 0)),
        ),
        compiler_params=pltpu.CompilerParams(
            dimension_semantics=("parallel",),   # shard batch tiles across TCs (v7x)
            vmem_limit_bytes=32 * 1024 * 1024,   # sized for v7x's smaller VMEM
        ),
        cost_estimate=cost,
    )(x, w1p, b1p, w2p, b2p)

    # Strip batch / feature padding.
    return out_padded[:B, :feature_dim]


def init_params(key, state_dim, action_dim, feature_dim, ld_hidden_dim,
                dtype=jnp.float32):
    """Deterministic synthetic init (stands in for utils.weight_init)."""
    k1, k2 = jax.random.split(key, 2)
    in_dim = state_dim + action_dim
    # Weights stored transposed vs. PyTorch: [in_features, out_features].
    w1 = jax.random.normal(k1, (in_dim, ld_hidden_dim), dtype) / jnp.sqrt(in_dim)
    b1 = jnp.zeros((1, ld_hidden_dim), dtype)
    w2 = jax.random.normal(k2, (ld_hidden_dim, feature_dim), dtype) / jnp.sqrt(ld_hidden_dim)
    b2 = jnp.zeros((1, feature_dim), dtype)
    return {"w1": w1, "b1": b1, "w2": w2, "b2": b2}


def _reference(states, actions, params):
    h = jnp.concatenate([states, actions], axis=1)
    h = jnp.maximum(h @ params["w1"] + params["b1"], 0.0)
    return h @ params["w2"] + params["b2"]


if __name__ == "__main__":
    # Small shapes consistent with the module's forward.
    B, state_dim, action_dim, feature_dim, ld_hidden_dim = 8, 16, 8, 16, 32

    key = jax.random.PRNGKey(0)
    ks, ka, kp = jax.random.split(key, 3)
    states = jax.random.normal(ks, (B, state_dim), jnp.float32)
    actions = jax.random.normal(ka, (B, action_dim), jnp.float32)
    params = init_params(kp, state_dim, action_dim, feature_dim, ld_hidden_dim)

    fwd = jax.jit(functools.partial(ld_decoder_forward, mxu_dtype=None))
    out = fwd(states, actions, params)
    jax.block_until_ready(out)

    ref = _reference(states, actions, params)
    assert out.shape == (B, feature_dim)
    assert jnp.allclose(out, ref, atol=1e-5, rtol=1e-5)

    # bf16-MXU path (v6e/v7x): same kernel, looser tolerance.
    fwd_bf16 = jax.jit(functools.partial(ld_decoder_forward, mxu_dtype=jnp.bfloat16))
    out_bf16 = fwd_bf16(states, actions, params)
    jax.block_until_ready(out_bf16)
    assert out_bf16.shape == (B, feature_dim)
    assert jnp.allclose(out_bf16, ref, atol=3e-2, rtol=3e-2)

    print("KERNEL_OK")
</pallas_src>

<mosaic_0001>
module attributes {stable_mosaic.version = 11 : i64} {
  func.func @_lddecoder_kernel(%arg0: i32, %arg1: memref<8x128xf32, #tpu.memory_space<vmem>>, %arg2: memref<128x128xf32, #tpu.memory_space<vmem>>, %arg3: memref<1x128xf32, #tpu.memory_space<vmem>>, %arg4: memref<128x128xf32, #tpu.memory_space<vmem>>, %arg5: memref<1x128xf32, #tpu.memory_space<vmem>>, %arg6: memref<8x128xf32, #tpu.memory_space<vmem>>) attributes {dimension_semantics = [#tpu.dimension_semantics<parallel>], iteration_bounds = array<i64: 1>, scalar_prefetch = 0 : i64, scratch_operands = 0 : i64, tpu.core_type = #tpu.core_type<tc>, window_params = [{transform_indices = @transform_0, window_bounds = array<i64: 8, 128>}, {pipeline_mode = #tpu.pipeline_mode<synchronous>, transform_indices = @transform_1, window_bounds = array<i64: 128, 128>}, {pipeline_mode = #tpu.pipeline_mode<synchronous>, transform_indices = @transform_2, window_bounds = array<i64: 1, 128>}, {pipeline_mode = #tpu.pipeline_mode<synchronous>, transform_indices = @transform_3, window_bounds = array<i64: 128, 128>}, {pipeline_mode = #tpu.pipeline_mode<synchronous>, transform_indices = @transform_4, window_bounds = array<i64: 1, 128>}, {transform_indices = @transform_5, window_bounds = array<i64: 8, 128>}]} {
    %c0 = arith.constant 0 : index
    %c0_0 = arith.constant 0 : index
    %0 = vector.load %arg1[%c0, %c0_0] : memref<8x128xf32, #tpu.memory_space<vmem>>, vector<8x128xf32>
    %c0_1 = arith.constant 0 : index
    %c0_2 = arith.constant 0 : index
    %1 = vector.load %arg2[%c0_1, %c0_2] : memref<128x128xf32, #tpu.memory_space<vmem>>, vector<128x128xf32>
    %cst = arith.constant dense<0.000000e+00> : vector<8x128xf32>
    %2 = tpu.matmul %0, %1, %cst {dimension_numbers = #tpu.dot_dimension_numbers<[1], [0], [0], [1], [0, 0, 1, 1], [], []>} : vector<8x128xf32>, vector<128x128xf32>, vector<8x128xf32> -> vector<8x128xf32>
    %c0_3 = arith.constant 0 : index
    %c0_4 = arith.constant 0 : index
    %3 = vector.load %arg3[%c0_3, %c0_4] : memref<1x128xf32, #tpu.memory_space<vmem>>, vector<1x128xf32>
    %4 = vector.broadcast %3 : vector<1x128xf32> to vector<8x128xf32>
    %5 = arith.addf %2, %4 : vector<8x128xf32>
    %cst_5 = arith.constant 0.000000e+00 : f32
    %6 = vector.broadcast %cst_5 : f32 to vector<8x128xf32>
    %7 = arith.maximumf %5, %6 : vector<8x128xf32>
    %c0_6 = arith.constant 0 : index
    %c0_7 = arith.constant 0 : index
    %8 = vector.load %arg4[%c0_6, %c0_7] : memref<128x128xf32, #tpu.memory_space<vmem>>, vector<128x128xf32>
    %cst_8 = arith.constant dense<0.000000e+00> : vector<8x128xf32>
    %9 = tpu.matmul %7, %8, %cst_8 {dimension_numbers = #tpu.dot_dimension_numbers<[1], [0], [0], [1], [0, 0, 1, 1], [], []>} : vector<8x128xf32>, vector<128x128xf32>, vector<8x128xf32> -> vector<8x128xf32>
    %c0_9 = arith.constant 0 : index
    %c0_10 = arith.constant 0 : index
    %10 = vector.load %arg5[%c0_9, %c0_10] : memref<1x128xf32, #tpu.memory_space<vmem>>, vector<1x128xf32>
    %11 = vector.broadcast %10 : vector<1x128xf32> to vector<8x128xf32>
    %12 = arith.addf %9, %11 : vector<8x128xf32>
    %c0_11 = arith.constant 0 : index
    %c0_12 = arith.constant 0 : index
    %13 = vector.load %arg6[%c0_11, %c0_12] : memref<8x128xf32, #tpu.memory_space<vmem>>, vector<8x128xf32>
    tpu.vector_store %arg6[%c0_11, %c0_12], %12 {strides = array<i32>} : memref<8x128xf32, #tpu.memory_space<vmem>>, vector<8x128xf32>,
    return
  }
  func.func @transform_0(%arg0: i32) -> (i32, i32) {
    %c0_i32 = arith.constant 0 : i32
    %c0_i32_0 = arith.constant 0 : i32
    return %arg0, %c0_i32 : i32, i32
  }
  func.func @transform_1(%arg0: i32) -> (i32, i32) {
    %c0_i32 = arith.constant 0 : i32
    %c0_i32_0 = arith.constant 0 : i32
    %c0_i32_1 = arith.constant 0 : i32
    return %c0_i32, %c0_i32_0 : i32, i32
  }
  func.func @transform_2(%arg0: i32) -> (i32, i32) {
    %c0_i32 = arith.constant 0 : i32
    %c0_i32_0 = arith.constant 0 : i32
    %c0_i32_1 = arith.constant 0 : i32
    return %c0_i32, %c0_i32_0 : i32, i32
  }
  func.func @transform_3(%arg0: i32) -> (i32, i32) {
    %c0_i32 = arith.constant 0 : i32
    %c0_i32_0 = arith.constant 0 : i32
    %c0_i32_1 = arith.constant 0 : i32
    return %c0_i32, %c0_i32_0 : i32, i32
  }
  func.func @transform_4(%arg0: i32) -> (i32, i32) {
    %c0_i32 = arith.constant 0 : i32
    %c0_i32_0 = arith.constant 0 : i32
    %c0_i32_1 = arith.constant 0 : i32
    return %c0_i32, %c0_i32_0 : i32, i32
  }
  func.func @transform_5(%arg0: i32) -> (i32, i32) {
    %c0_i32 = arith.constant 0 : i32
    %c0_i32_0 = arith.constant 0 : i32
    return %arg0, %c0_i32 : i32, i32
  }
}

</mosaic_0001>

<llo_original>
// kernel: ld_decoder_forward.1
$region0: #{ld_decoder_forward.1}
  #allocation0 [shape = 'u32[]', space=smem, size = 0x4, offset = 0x4, fixed_abs, tag = 'smem constant byte address 0x4 - core index']
  #allocation1 [shape = 'u32[72,128]{1,0:T(1,128)}', space=vmem, size = 0x9000, scoped, tag = 'internal scratch']
  %s0 = inlined_call_operand.vmem [shape: f32[8,128], index: 0, kind: input, shape index: {}]
  %s1 = inlined_call_operand.vmem [shape: f32[128,128], index: 1, kind: input, shape index: {}]
  %s2 = inlined_call_operand.vmem [shape: f32[1,128], index: 2, kind: input, shape index: {}]
  %s3 = inlined_call_operand.vmem [shape: f32[128,128], index: 3, kind: input, shape index: {}]
  %s4 = inlined_call_operand.vmem [shape: f32[1,128], index: 4, kind: input, shape index: {}]
  %s5 = inlined_call_operand.hbm [shape: f32[8,128], index: 5, kind: output, shape index: {}]
  %s6 = sld [smem:[#allocation0]]
  $region30: #{ld_decoder_forward.1} parent=0
    _
  %s8 = ssub.s32 1, %s6
  %s9 = scalar_select 0, %s8, %s6
  $region1: #{ld_decoder_forward.1} parent=0
    #allocation2 [shape = 'u8[4096]{0}', space=vmem, size = 0x1000, scoped, tag = 'output window, operand 0, single buffered']
    #allocation3 [shape = 's32[1]{0}', space=sflag, size = 0x4, scoped, tag = 'scoped memory for ld_decoder_forward.1']
    %10 = vsyncpa [#allocation3], 0
    // Predicated region
    $region2: #{ld_decoder_forward.1} parent=1 // pred_check
      _
    $region3: #{ld_decoder_forward.1} parent=1 // pred_check_branch
      %12 = sbr.rel (0) target = $region5
    $region4: #{ld_decoder_forward.1} parent=1 // pred_region
      _
    $region5: #{ld_decoder_forward.1} parent=1 // pred_fallthru
      _
    // Predicated region
    $region6: #{ld_decoder_forward.1} parent=1 // pred_check
      _
    $region7: #{ld_decoder_forward.1} parent=1 // pred_check_branch
      %14 = sbr.rel (0) target = $region9
    $region8: #{ld_decoder_forward.1} parent=1 // pred_region
      _
    $region9: #{ld_decoder_forward.1} parent=1 // pred_fallthru
      _
    // Predicated region
    $region10: #{ld_decoder_forward.1} parent=1 // pred_check
      _
    $region11: #{ld_decoder_forward.1} parent=1 // pred_check_branch
      %16 = sbr.rel (0) target = $region13
    $region12: #{ld_decoder_forward.1} parent=1 // pred_region
      _
    $region13: #{ld_decoder_forward.1} parent=1 // pred_fallthru
      _
    // Predicated region
    $region14: #{ld_decoder_forward.1} parent=1 // pred_check
      _
    $region15: #{ld_decoder_forward.1} parent=1 // pred_check_branch
      %18 = sbr.rel (0) target = $region17
    $region16: #{ld_decoder_forward.1} parent=1 // pred_region
      _
    $region17: #{ld_decoder_forward.1} parent=1 // pred_fallthru
      _
    // Predicated region
    $region18: #{ld_decoder_forward.1} parent=1 // pred_check
      _
    $region19: #{ld_decoder_forward.1} parent=1 // pred_check_branch
      %20 = sbr.rel (0) target = $region21
    $region20: #{ld_decoder_forward.1} parent=1 // pred_region
      _
    $region21: #{ld_decoder_forward.1} parent=1 // pred_fallthru
      _
    %v21 = vld [vmem:[%s0] sm:$0xff]
    %v22 = vld [vmem:[%s1] sm:$0xff]
    %v23 = vld [vmem:[%s1 + $0x8] sm:$0xff]
    %v24 = vld [vmem:[%s1 + $0x10] sm:$0xff]
    %v25 = vld [vmem:[%s1 + $0x18] sm:$0xff]
    %v26 = vld [vmem:[%s1 + $0x20] sm:$0xff]
    %v27 = vld [vmem:[%s1 + $0x28] sm:$0xff]
    %v28 = vld [vmem:[%s1 + $0x30] sm:$0xff]
    %v29 = vld [vmem:[%s1 + $0x38] sm:$0xff]
    %v30 = vld [vmem:[%s1 + $0x40] sm:$0xff]
    %v31 = vld [vmem:[%s1 + $0x48] sm:$0xff]
    %v32 = vld [vmem:[%s1 + $0x50] sm:$0xff]
    %v33 = vld [vmem:[%s1 + $0x58] sm:$0xff]
    %v34 = vld [vmem:[%s1 + $0x60] sm:$0xff]
    %v35 = vld [vmem:[%s1 + $0x68] sm:$0xff]
    %v36 = vld [vmem:[%s1 + $0x70] sm:$0xff]
    %v37 = vld [vmem:[%s1 + $0x78] sm:$0xff]
    %v38 = vld [vmem:[%s2] sm:$0x1]
    %v40 = vperm.slane %v38, 0
    %42 = vmatpush.msra.mxu0 %v37
    %43 = vmatpush.msra.mxu0 %v36
    %44 = vmatpush.msra.mxu0 %v35
    %45 = vmatpush.msra.mxu0 %v34
    %46 = vmatpush.msra.mxu0 %v33
    %47 = vmatpush.msra.mxu0 %v32
    %48 = vmatpush.msra.mxu0 %v31
    %49 = vmatpush.msra.mxu0 %v30
    %50 = vmatpush.msra.mxu0 %v29
    %51 = vmatpush.msra.mxu0 %v28
    %52 = vmatpush.msra.mxu0 %v27
    %53 = vmatpush.msra.mxu0 %v26
    %54 = vmatpush.msra.mxu0 %v25
    %55 = vmatpush.msra.mxu0 %v24
    %56 = vmatpush.msra.mxu0 %v23
    %57 = vmatpush.msra.mxu0 %v22
    %58 = vmatmul.f32.gmra.mxu0 %v21
    %v59 = vpop.f32.mrf.mxu0
    %v60 = vadd.f32 %v40, %v59
    %61 = vdwg.mxu0
    %v62 = vmax.f32 %v60, 0.0
    %v63 = vld [vmem:[%s3] sm:$0xff]
    %v64 = vld [vmem:[%s3 + $0x8] sm:$0xff]
    %v65 = vld [vmem:[%s3 + $0x10] sm:$0xff]
    %v66 = vld [vmem:[%s3 + $0x18] sm:$0xff]
    %v67 = vld [vmem:[%s3 + $0x20] sm:$0xff]
    %v68 = vld [vmem:[%s3 + $0x28] sm:$0xff]
    %v69 = vld [vmem:[%s3 + $0x30] sm:$0xff]
    %v70 = vld [vmem:[%s3 + $0x38] sm:$0xff]
    %v71 = vld [vmem:[%s3 + $0x40] sm:$0xff]
    %v72 = vld [vmem:[%s3 + $0x48] sm:$0xff]
    %v73 = vld [vmem:[%s3 + $0x50] sm:$0xff]
    %v74 = vld [vmem:[%s3 + $0x58] sm:$0xff]
    %v75 = vld [vmem:[%s3 + $0x60] sm:$0xff]
    %v76 = vld [vmem:[%s3 + $0x68] sm:$0xff]
    %v77 = vld [vmem:[%s3 + $0x70] sm:$0xff]
    %v78 = vld [vmem:[%s3 + $0x78] sm:$0xff]
    %v79 = vld [vmem:[%s4] sm:$0x1]
    %v81 = vperm.slane %v79, 0
    %83 = vmatpush.msra.mxu0 %v78
    %84 = vmatpush.msra.mxu0 %v77
    %85 = vmatpush.msra.mxu0 %v76
    %86 = vmatpush.msra.mxu0 %v75
    %87 = vmatpush.msra.mxu0 %v74
    %88 = vmatpush.msra.mxu0 %v73
    %89 = vmatpush.msra.mxu0 %v72
    %90 = vmatpush.msra.mxu0 %v71
    %91 = vmatpush.msra.mxu0 %v70
    %92 = vmatpush.msra.mxu0 %v69
    %93 = vmatpush.msra.mxu0 %v68
    %94 = vmatpush.msra.mxu0 %v67
    %95 = vmatpush.msra.mxu0 %v66
    %96 = vmatpush.msra.mxu0 %v65
    %97 = vmatpush.msra.mxu0 %v64
    %98 = vmatpush.msra.mxu0 %v63
    %99 = vmatmul.f32.gmra.mxu0 %v62
    %v100 = vpop.f32.mrf.mxu0
    %v101 = vadd.f32 %v81, %v100
    %102 = vdwg.mxu0
    %103 = vst [vmem:[#allocation2] sm:$0xff] %v101
    // Predicated region
    $region22: #{ld_decoder_forward.1} parent=1 // pred_check
      _
    $region23: #{ld_decoder_forward.1} parent=1 // pred_check_branch
      %105 = sbr.rel (0) target = $region25
    $region24: #{ld_decoder_forward.1} parent=1 // pred_region
      %107 = vsyncadd [#allocation3], 0
      %s109 = sshll.u32 [#allocation2], 4
      %s110 = int_to_ptr.vmem [resolvable:$true] %s109
      %s111 = sshll.u32 %s5, 4
      %s112 = int_to_ptr.hbm [resolvable:$true] %s111
      %114 = dma.vmem_to_hbm [thread:$0]  %s110, 128, %s112, [#allocation3]
    $region25: #{ld_decoder_forward.1} parent=1 // pred_fallthru
      _
    // Predicated region
    $region26: #{ld_decoder_forward.1} parent=1 // pred_check
      _
    $region27: #{ld_decoder_forward.1} parent=1 // pred_check_branch
      %116 = sbr.rel (0) target = $region29
    $region28: #{ld_decoder_forward.1} parent=1 // pred_region
      %118 = dma.done [#allocation3], 128
    $region29: #{ld_decoder_forward.1} parent=1 // pred_fallthru
      _
    %119 = vsyncpa [#allocation3], 1

</llo_original>
